<compile_context>
chip_gen: v7x
topology: tpu7x:2x2x1
jax: 0.10.0
libtpu: 0.0.40
codegen_flags: <defaults>
</compile_context>

<pallas_src>
import jax
import jax.numpy as jnp
from jax import lax
from jax.experimental import pallas as pl
from jax.experimental.pallas import tpu as pltpu


def _round_up(x, m):
    return ((x + m - 1) // m) * m


# -----------------------------------------------------------------------------
# Shared epilogue: both loss reductions -> lane-dense (1, 8, 128) partials block.
#   lane 0 = sum(sq_err * avail)      (MSE partial)
#   lane 1 = 0.5 * sum((diff*avail)^2) (NLL partial)
# -----------------------------------------------------------------------------
def _write_loss_partials(pred, t_ref, a_ref, part_ref):
    diff = t_ref[...] - pred                 # (TB, F) f32; padded rows have a==0
    masked = diff * a_ref[...]               # computed once, reused twice
    mse_sum = jnp.sum(masked * diff)         # sum(sq_err * avail)
    nll_sum = 0.5 * jnp.sum(masked * masked)
    lane = lax.broadcasted_iota(jnp.int32, (1, 8, 128), 2)
    part_ref[...] = jnp.where(
        lane == 0, mse_sum, jnp.where(lane == 1, nll_sum, 0.0)
    ).astype(jnp.float32)


# -----------------------------------------------------------------------------
# Fast path: whole contraction dim resident (grid = (batch_tiles,)).
# -----------------------------------------------------------------------------
def _fused_kernel_single(x_ref, w_ref, b_ref, t_ref, a_ref, part_ref):
    pred = (
        jnp.dot(
            x_ref[...].astype(jnp.bfloat16),   # cast in-kernel; no HBM bf16 copy
            w_ref[...],                        # bf16 (D, F) weight, resident
            preferred_element_type=jnp.float32,
        )
        + b_ref[...]
    )
    _write_loss_partials(pred, t_ref, a_ref, part_ref)


# -----------------------------------------------------------------------------
# Fallback for very large D: tiled contraction with an f32 VMEM accumulator.
# Grid = (batch_tiles, k_tiles); k is the reduction axis (last, "arbitrary").
# -----------------------------------------------------------------------------
def _fused_kernel_ktiled(x_ref, w_ref, b_ref, t_ref, a_ref, part_ref, acc_ref):
    k = pl.program_id(1)

    @pl.when(k == 0)
    def _():
        acc_ref[...] = jnp.zeros_like(acc_ref)

    acc_ref[...] += jnp.dot(
        x_ref[...].astype(jnp.bfloat16),
        w_ref[...],
        preferred_element_type=jnp.float32,
    )

    @pl.when(k == pl.num_programs(1) - 1)
    def _():
        pred = acc_ref[...] + b_ref[...]
        _write_loss_partials(pred, t_ref, a_ref, part_ref)


def lyft_regressor_forward(image, targets, target_availabilities, w, b):
    """Mirrors LyftRegressor.forward: returns (loss, metrics) as device scalars."""
    B, T, C2 = targets.shape
    F = T * C2
    D = w.shape[0]

    # ---- batch tiling -------------------------------------------------------
    TB = min(256, _round_up(B, 8))
    # Prefer >= 2 batch tiles so v7x's second TensorCore gets work.
    while TB > 8 and -(-B // TB) < 2:
        TB = _round_up(TB // 2, 8)
    B_pad = _round_up(B, TB)
    nb = B_pad // TB

    # ---- contraction handling: keep weight resident when it (plus a double-
    # buffered x tile) fits a conservative VMEM budget (works on v7x's 64 MiB).
    x = image.reshape(B, -1)                      # (B, D), native dtype, no copy
    single_k_bytes = 2 * TB * D * x.dtype.itemsize + 2 * D * F * 2
    use_single_k = single_k_bytes <= 24 * 1024 * 1024

    w_bf = w.astype(jnp.bfloat16)                 # one-time parameter cast
    if use_single_k:
        TK, D_pad, nk = D, D, 1
    else:
        TK = 2048 if D >= 2048 else _round_up(D, 128)
        D_pad = _round_up(D, TK)
        nk = D_pad // TK

    # ---- (tiny / rare) padding: zero-padded rows/cols contribute exactly 0 --
    pad_b, pad_d = B_pad - B, D_pad - D
    if pad_b or pad_d:
        # Cast to bf16 *before* padding so the temp is half-size.
        x = jnp.pad(x.astype(jnp.bfloat16), ((0, pad_b), (0, pad_d)))
    if pad_d:
        w_bf = jnp.pad(w_bf, ((0, pad_d), (0, 0)))

    b_row = b.astype(jnp.float32).reshape(1, F)
    t_flat = targets.reshape(B, F).astype(jnp.float32)
    # (B, T) -> (B, F) availability mask; with F=16 (no 128-lane pad) this host
    # broadcast is negligible next to the x / w streams.
    a_flat = jnp.broadcast_to(
        target_availabilities.astype(jnp.float32)[..., None], (B, T, C2)
    ).reshape(B, F)
    if pad_b:
        t_flat = jnp.pad(t_flat, ((0, pad_b), (0, 0)))
        a_flat = jnp.pad(a_flat, ((0, pad_b), (0, 0)))

    if use_single_k:
        kernel = _fused_kernel_single
        grid = (nb,)
        in_specs = [
            pl.BlockSpec((TB, D_pad), lambda bi: (bi, 0)),   # x tile (f32 or bf16)
            pl.BlockSpec((D_pad, F), lambda bi: (0, 0)),     # weight, resident
            pl.BlockSpec((1, F), lambda bi: (0, 0)),         # bias
            pl.BlockSpec((TB, F), lambda bi: (bi, 0)),       # targets
            pl.BlockSpec((TB, F), lambda bi: (bi, 0)),       # avails
        ]
        out_specs = pl.BlockSpec((1, 8, 128), lambda bi: (bi, 0, 0))
        scratch_shapes = []
        dims = ("parallel",)
    else:
        kernel = _fused_kernel_ktiled
        grid = (nb, nk)
        in_specs = [
            pl.BlockSpec((TB, TK), lambda bi, ki: (bi, ki)),
            pl.BlockSpec((TK, F), lambda bi, ki: (ki, 0)),
            pl.BlockSpec((1, F), lambda bi, ki: (0, 0)),
            pl.BlockSpec((TB, F), lambda bi, ki: (bi, 0)),
            pl.BlockSpec((TB, F), lambda bi, ki: (bi, 0)),
        ]
        out_specs = pl.BlockSpec((1, 8, 128), lambda bi, ki: (bi, 0, 0))
        scratch_shapes = [pltpu.VMEM((TB, F), jnp.float32)]
        dims = ("parallel", "arbitrary")

    partials = pl.pallas_call(
        kernel,
        out_shape=jax.ShapeDtypeStruct((nb, 8, 128), jnp.float32),
        grid=grid,
        in_specs=in_specs,
        out_specs=out_specs,
        scratch_shapes=scratch_shapes,
        compiler_params=pltpu.CompilerParams(
            dimension_semantics=dims,
            vmem_limit_bytes=48 * 1024 * 1024,
        ),
    )(x, w_bf, b_row, t_flat, a_flat)

    mse_sum = jnp.sum(partials[:, 0, 0])
    nll_sum = jnp.sum(partials[:, 0, 1])
    loss = mse_sum / (B * T * C2)             # mean(sq_err * avail) over all elems
    nll = nll_sum / B                         # batch mean of 0.5 * masked sq-err sum

    # TODO(synk): ppe.reporting.report (host-side metric logging) and .item()
    # host syncs have no Pallas equivalent; metrics stay as device scalars.
    metrics = {"loss": loss, "nll": nll}
    return loss, metrics


if __name__ == "__main__":
    key = jax.random.PRNGKey(0)
    k_img, k_tgt, k_av, k_w, k_b = jax.random.split(key, 5)

    # Small shapes consistent with the module's forward.
    B, C, H, W = 2, 4, 16, 16                 # image NCHW
    T = 8                                     # trajectory timesteps, 2D coords
    D = C * H * W
    F = T * 2

    image = jax.random.normal(k_img, (B, C, H, W), dtype=jnp.float32)
    targets = jax.random.normal(k_tgt, (B, T, 2), dtype=jnp.float32)
    target_availabilities = (
        jax.random.uniform(k_av, (B, T)) > 0.2
    ).astype(jnp.float32)

    # Deterministic synthetic predictor parameters (linear head).
    w = jax.random.normal(k_w, (D, F), dtype=jnp.float32) * 0.02
    b = jax.random.normal(k_b, (F,), dtype=jnp.float32) * 0.02

    fwd = jax.jit(lyft_regressor_forward)
    loss, metrics = fwd(image, targets, target_availabilities, w, b)
    jax.block_until_ready((loss, metrics))

    # Correctness check against a pure-JAX reference using the same bf16 cast
    # for the dot (so the comparison is apples-to-apples).
    x_ref = image.reshape(B, -1).astype(jnp.bfloat16)
    pred_ref = (
        jnp.dot(x_ref, w.astype(jnp.bfloat16), preferred_element_type=jnp.float32)
        + b
    )
    diff_ref = targets.reshape(B, F) - pred_ref
    a_ref = jnp.broadcast_to(
        target_availabilities[..., None], (B, T, 2)
    ).reshape(B, F)
    mse_ref = jnp.mean(diff_ref * diff_ref * a_ref)
    nll_ref = jnp.mean(0.5 * jnp.sum((diff_ref * a_ref) ** 2, axis=-1))
    assert jnp.allclose(loss, mse_ref, rtol=1e-5, atol=1e-5)
    assert jnp.allclose(metrics["nll"], nll_ref, rtol=1e-5, atol=1e-5)

    print("KERNEL_OK")
</pallas_src>

<mosaic_0001>
module attributes {stable_mosaic.version = 11 : i64} {
  func.func @_fused_kernel_single(%arg0: i32, %arg1: memref<8x1024xbf16, #tpu.memory_space<vmem>>, %arg2: memref<1024x16xbf16, #tpu.memory_space<vmem>>, %arg3: memref<1x16xf32, #tpu.memory_space<vmem>>, %arg4: memref<8x16xf32, #tpu.memory_space<vmem>>, %arg5: memref<8x16xf32, #tpu.memory_space<vmem>>, %arg6: memref<1x8x128xf32, #tpu.memory_space<vmem>>) attributes {dimension_semantics = [#tpu.dimension_semantics<parallel>], iteration_bounds = array<i64: 1>, scalar_prefetch = 0 : i64, scratch_operands = 0 : i64, tpu.core_type = #tpu.core_type<tc>, window_params = [{transform_indices = @transform_0, window_bounds = array<i64: 8, 1024>}, {pipeline_mode = #tpu.pipeline_mode<synchronous>, transform_indices = @transform_1, window_bounds = array<i64: 1024, 16>}, {pipeline_mode = #tpu.pipeline_mode<synchronous>, transform_indices = @transform_2, window_bounds = array<i64: 1, 16>}, {transform_indices = @transform_3, window_bounds = array<i64: 8, 16>}, {transform_indices = @transform_4, window_bounds = array<i64: 8, 16>}, {transform_indices = @transform_5, window_bounds = array<i64: 1, 8, 128>}]} {
    %c0 = arith.constant 0 : index
    %c0_0 = arith.constant 0 : index
    %0 = vector.load %arg1[%c0, %c0_0] : memref<8x1024xbf16, #tpu.memory_space<vmem>>, vector<8x1024xbf16>
    %c0_1 = arith.constant 0 : index
    %c0_2 = arith.constant 0 : index
    %1 = vector.load %arg2[%c0_1, %c0_2] : memref<1024x16xbf16, #tpu.memory_space<vmem>>, vector<1024x16xbf16>
    %cst = arith.constant dense<0.000000e+00> : vector<8x16xf32>
    %2 = tpu.matmul %0, %1, %cst {dimension_numbers = #tpu.dot_dimension_numbers<[1], [0], [0], [1], [0, 0, 1, 1], [], []>} : vector<8x1024xbf16>, vector<1024x16xbf16>, vector<8x16xf32> -> vector<8x16xf32>
    %c0_3 = arith.constant 0 : index
    %c0_4 = arith.constant 0 : index
    %3 = vector.load %arg3[%c0_3, %c0_4] : memref<1x16xf32, #tpu.memory_space<vmem>>, vector<1x16xf32>
    %4 = vector.broadcast %3 : vector<1x16xf32> to vector<8x16xf32>
    %5 = arith.addf %2, %4 : vector<8x16xf32>
    %c0_5 = arith.constant 0 : index
    %c0_6 = arith.constant 0 : index
    %6 = vector.load %arg4[%c0_5, %c0_6] : memref<8x16xf32, #tpu.memory_space<vmem>>, vector<8x16xf32>
    %7 = arith.subf %6, %5 : vector<8x16xf32>
    %c0_7 = arith.constant 0 : index
    %c0_8 = arith.constant 0 : index
    %8 = vector.load %arg5[%c0_7, %c0_8] : memref<8x16xf32, #tpu.memory_space<vmem>>, vector<8x16xf32>
    %9 = arith.mulf %7, %8 : vector<8x16xf32>
    %10 = arith.mulf %9, %7 : vector<8x16xf32>
    %11 = vector.shape_cast %10 : vector<8x16xf32> to vector<1x8x16xf32>
    %cst_9 = arith.constant dense<0.000000e+00> : vector<1xf32>
    %12 = vector.multi_reduction <add>, %11, %cst_9 [1, 2] : vector<1x8x16xf32> to vector<1xf32>
    %13 = vector.shape_cast %12 : vector<1xf32> to vector<1x1x1xf32>
    %14 = vector.extract %13[0, 0, 0] : f32 from vector<1x1x1xf32>
    %15 = arith.mulf %9, %9 : vector<8x16xf32>
    %16 = vector.shape_cast %15 : vector<8x16xf32> to vector<1x8x16xf32>
    %cst_10 = arith.constant dense<0.000000e+00> : vector<1xf32>
    %17 = vector.multi_reduction <add>, %16, %cst_10 [1, 2] : vector<1x8x16xf32> to vector<1xf32>
    %18 = vector.shape_cast %17 : vector<1xf32> to vector<1x1x1xf32>
    %19 = vector.extract %18[0, 0, 0] : f32 from vector<1x1x1xf32>
    %cst_11 = arith.constant 5.000000e-01 : f32
    %20 = arith.mulf %cst_11, %19 : f32
    %21 = tpu.iota {dimensions = array<i32: 2>} : vector<1x8x128xi32>
    %c0_i32 = arith.constant 0 : i32
    %22 = vector.broadcast %c0_i32 : i32 to vector<1x8x128xi32>
    %23 = arith.cmpi eq, %21, %22 : vector<1x8x128xi32>
    %c1_i32 = arith.constant 1 : i32
    %24 = vector.broadcast %c1_i32 : i32 to vector<1x8x128xi32>
    %25 = arith.cmpi eq, %21, %24 : vector<1x8x128xi32>
    %cst_12 = arith.constant 0.000000e+00 : f32
    %26 = vector.broadcast %20 : f32 to vector<1x8x128xf32>
    %27 = vector.broadcast %cst_12 : f32 to vector<1x8x128xf32>
    %28 = arith.select %25, %26, %27 : vector<1x8x128xi1>, vector<1x8x128xf32>
    %29 = vector.broadcast %14 : f32 to vector<1x8x128xf32>
    %30 = arith.select %23, %29, %28 : vector<1x8x128xi1>, vector<1x8x128xf32>
    %c0_13 = arith.constant 0 : index
    %c0_14 = arith.constant 0 : index
    %c0_15 = arith.constant 0 : index
    %31 = vector.load %arg6[%c0_13, %c0_14, %c0_15] : memref<1x8x128xf32, #tpu.memory_space<vmem>>, vector<1x8x128xf32>
    tpu.vector_store %arg6[%c0_13, %c0_14, %c0_15], %30 {strides = array<i32>} : memref<1x8x128xf32, #tpu.memory_space<vmem>>, vector<1x8x128xf32>,
    return
  }
  func.func @transform_0(%arg0: i32) -> (i32, i32) {
    %c0_i32 = arith.constant 0 : i32
    %c0_i32_0 = arith.constant 0 : i32
    return %arg0, %c0_i32 : i32, i32
  }
  func.func @transform_1(%arg0: i32) -> (i32, i32) {
    %c0_i32 = arith.constant 0 : i32
    %c0_i32_0 = arith.constant 0 : i32
    %c0_i32_1 = arith.constant 0 : i32
    return %c0_i32, %c0_i32_0 : i32, i32
  }
  func.func @transform_2(%arg0: i32) -> (i32, i32) {
    %c0_i32 = arith.constant 0 : i32
    %c0_i32_0 = arith.constant 0 : i32
    %c0_i32_1 = arith.constant 0 : i32
    return %c0_i32, %c0_i32_0 : i32, i32
  }
  func.func @transform_3(%arg0: i32) -> (i32, i32) {
    %c0_i32 = arith.constant 0 : i32
    %c0_i32_0 = arith.constant 0 : i32
    return %arg0, %c0_i32 : i32, i32
  }
  func.func @transform_4(%arg0: i32) -> (i32, i32) {
    %c0_i32 = arith.constant 0 : i32
    %c0_i32_0 = arith.constant 0 : i32
    return %arg0, %c0_i32 : i32, i32
  }
  func.func @transform_5(%arg0: i32) -> (i32, i32, i32) {
    %c0_i32 = arith.constant 0 : i32
    %c0_i32_0 = arith.constant 0 : i32
    %c0_i32_1 = arith.constant 0 : i32
    return %arg0, %c0_i32, %c0_i32_0 : i32, i32, i32
  }
}

</mosaic_0001>

<llo_original>
// kernel: lyft_regressor_forward.1
$region0: #{lyft_regressor_forward.1}
  #allocation0 [shape = 'u32[]', space=smem, size = 0x4, offset = 0x4, fixed_abs, tag = 'smem constant byte address 0x4 - core index']
  #allocation1 [shape = 'u32[144,128]{1,0:T(1,128)}', space=vmem, size = 0x12000, scoped, tag = 'internal scratch']
  %s0 = inlined_call_operand.vmem [shape: bf16[8,1024], index: 0, kind: input, shape index: {}]
  %s1 = inlined_call_operand.vmem [shape: bf16[1024,16], index: 1, kind: input, shape index: {}]
  %s2 = inlined_call_operand.vmem [shape: f32[1,16], index: 2, kind: input, shape index: {}]
  %s3 = inlined_call_operand.vmem [shape: f32[8,16], index: 3, kind: input, shape index: {}]
  %s4 = inlined_call_operand.vmem [shape: f32[8,16], index: 4, kind: input, shape index: {}]
  %s5 = inlined_call_operand.vmem [shape: f32[1,8,128], index: 5, kind: output, shape index: {}]
  %s6 = sld [smem:[#allocation0]]
  $region30: #{lyft_regressor_forward.1} parent=0
    _
  %s8 = ssub.s32 1, %s6
  %s9 = scalar_select 0, %s8, %s6
  // Predicated region
  $region2: #{lyft_regressor_forward.1} parent=0 // pred_check
    _
  $region3: #{lyft_regressor_forward.1} parent=0 // pred_check_branch
    %11 = sbr.rel (0) target = $region5
  $region4: #{lyft_regressor_forward.1} parent=0 // pred_region
    _
  $region5: #{lyft_regressor_forward.1} parent=0 // pred_fallthru
    _
  // Predicated region
  $region6: #{lyft_regressor_forward.1} parent=0 // pred_check
    _
  $region7: #{lyft_regressor_forward.1} parent=0 // pred_check_branch
    %13 = sbr.rel (0) target = $region9
  $region8: #{lyft_regressor_forward.1} parent=0 // pred_region
    _
  $region9: #{lyft_regressor_forward.1} parent=0 // pred_fallthru
    _
  // Predicated region
  $region10: #{lyft_regressor_forward.1} parent=0 // pred_check
    _
  $region11: #{lyft_regressor_forward.1} parent=0 // pred_check_branch
    %15 = sbr.rel (0) target = $region13
  $region12: #{lyft_regressor_forward.1} parent=0 // pred_region
    _
  $region13: #{lyft_regressor_forward.1} parent=0 // pred_fallthru
    _
  // Predicated region
  $region14: #{lyft_regressor_forward.1} parent=0 // pred_check
    _
  $region15: #{lyft_regressor_forward.1} parent=0 // pred_check_branch
    %17 = sbr.rel (0) target = $region17
  $region16: #{lyft_regressor_forward.1} parent=0 // pred_region
    _
  $region17: #{lyft_regressor_forward.1} parent=0 // pred_fallthru
    _
  // Predicated region
  $region18: #{lyft_regressor_forward.1} parent=0 // pred_check
    _
  $region19: #{lyft_regressor_forward.1} parent=0 // pred_check_branch
    %19 = sbr.rel (0) target = $region21
  $region20: #{lyft_regressor_forward.1} parent=0 // pred_region
    _
  $region21: #{lyft_regressor_forward.1} parent=0 // pred_fallthru
    _
  %v21 = vld [vmem:[%s0] sm:$0xff]
  %v22 = vld [vmem:[%s0 + $0x8] sm:$0xff]
  %v23 = vld [vmem:[%s0 + $0x10] sm:$0xff]
  %v24 = vld [vmem:[%s0 + $0x18] sm:$0xff]
  %v25 = vld [vmem:[%s1] sm:$0xf]
  %v26 = vld [vmem:[%s1 + $0x4] sm:$0xf]
  %v27 = vld [vmem:[%s1 + $0x8] sm:$0xf]
  %v28 = vld [vmem:[%s1 + $0xc] sm:$0xf]
  %v29 = vld [vmem:[%s1 + $0x10] sm:$0xf]
  %v30 = vld [vmem:[%s1 + $0x14] sm:$0xf]
  %v31 = vld [vmem:[%s1 + $0x18] sm:$0xf]
  %v32 = vld [vmem:[%s1 + $0x1c] sm:$0xf]
  %v33 = vld [vmem:[%s1 + $0x20] sm:$0xf]
  %v34 = vld [vmem:[%s1 + $0x24] sm:$0xf]
  %v35 = vld [vmem:[%s1 + $0x28] sm:$0xf]
  %v36 = vld [vmem:[%s1 + $0x2c] sm:$0xf]
  %v37 = vld [vmem:[%s1 + $0x30] sm:$0xf]
  %v38 = vld [vmem:[%s1 + $0x34] sm:$0xf]
  %v39 = vld [vmem:[%s1 + $0x38] sm:$0xf]
  %v40 = vld [vmem:[%s1 + $0x3c] sm:$0xf]
  %v41 = vld [vmem:[%s1 + $0x40] sm:$0xf]
  %v42 = vld [vmem:[%s1 + $0x44] sm:$0xf]
  %v43 = vld [vmem:[%s1 + $0x48] sm:$0xf]
  %v44 = vld [vmem:[%s1 + $0x4c] sm:$0xf]
  %v45 = vld [vmem:[%s1 + $0x50] sm:$0xf]
  %v46 = vld [vmem:[%s1 + $0x54] sm:$0xf]
  %v47 = vld [vmem:[%s1 + $0x58] sm:$0xf]
  %v48 = vld [vmem:[%s1 + $0x5c] sm:$0xf]
  %v49 = vld [vmem:[%s1 + $0x60] sm:$0xf]
  %v50 = vld [vmem:[%s1 + $0x64] sm:$0xf]
  %v51 = vld [vmem:[%s1 + $0x68] sm:$0xf]
  %v52 = vld [vmem:[%s1 + $0x6c] sm:$0xf]
  %v53 = vld [vmem:[%s1 + $0x70] sm:$0xf]
  %v54 = vld [vmem:[%s1 + $0x74] sm:$0xf]
  %v55 = vld [vmem:[%s1 + $0x78] sm:$0xf]
  %v56 = vld [vmem:[%s1 + $0x7c] sm:$0xf]
  %v57 = vld [vmem:[%s1 + $0x80] sm:$0xf]
  %v58 = vld [vmem:[%s1 + $0x84] sm:$0xf]
  %v59 = vld [vmem:[%s1 + $0x88] sm:$0xf]
  %v60 = vld [vmem:[%s1 + $0x8c] sm:$0xf]
  %v61 = vld [vmem:[%s1 + $0x90] sm:$0xf]
  %v62 = vld [vmem:[%s1 + $0x94] sm:$0xf]
  %v63 = vld [vmem:[%s1 + $0x98] sm:$0xf]
  %v64 = vld [vmem:[%s1 + $0x9c] sm:$0xf]
  %v65 = vld [vmem:[%s1 + $0xa0] sm:$0xf]
  %v66 = vld [vmem:[%s1 + $0xa4] sm:$0xf]
  %v67 = vld [vmem:[%s1 + $0xa8] sm:$0xf]
  %v68 = vld [vmem:[%s1 + $0xac] sm:$0xf]
  %v69 = vld [vmem:[%s1 + $0xb0] sm:$0xf]
  %v70 = vld [vmem:[%s1 + $0xb4] sm:$0xf]
  %v71 = vld [vmem:[%s1 + $0xb8] sm:$0xf]
  %v72 = vld [vmem:[%s1 + $0xbc] sm:$0xf]
  %v73 = vld [vmem:[%s1 + $0xc0] sm:$0xf]
  %v74 = vld [vmem:[%s1 + $0xc4] sm:$0xf]
  %v75 = vld [vmem:[%s1 + $0xc8] sm:$0xf]
  %v76 = vld [vmem:[%s1 + $0xcc] sm:$0xf]
  %v77 = vld [vmem:[%s1 + $0xd0] sm:$0xf]
  %v78 = vld [vmem:[%s1 + $0xd4] sm:$0xf]
  %v79 = vld [vmem:[%s1 + $0xd8] sm:$0xf]
  %v80 = vld [vmem:[%s1 + $0xdc] sm:$0xf]
  %v81 = vld [vmem:[%s1 + $0xe0] sm:$0xf]
  %v82 = vld [vmem:[%s1 + $0xe4] sm:$0xf]
  %v83 = vld [vmem:[%s1 + $0xe8] sm:$0xf]
  %v84 = vld [vmem:[%s1 + $0xec] sm:$0xf]
  %v85 = vld [vmem:[%s1 + $0xf0] sm:$0xf]
  %v86 = vld [vmem:[%s1 + $0xf4] sm:$0xf]
  %v87 = vld [vmem:[%s1 + $0xf8] sm:$0xf]
  %v88 = vld [vmem:[%s1 + $0xfc] sm:$0xf]
  %v89 = vld [vmem:[%s1 + $0x100] sm:$0xf]
  %v90 = vld [vmem:[%s1 + $0x104] sm:$0xf]
  %v91 = vld [vmem:[%s1 + $0x108] sm:$0xf]
  %v92 = vld [vmem:[%s1 + $0x10c] sm:$0xf]
  %v93 = vld [vmem:[%s1 + $0x110] sm:$0xf]
  %v94 = vld [vmem:[%s1 + $0x114] sm:$0xf]
  %v95 = vld [vmem:[%s1 + $0x118] sm:$0xf]
  %v96 = vld [vmem:[%s1 + $0x11c] sm:$0xf]
  %v97 = vld [vmem:[%s1 + $0x120] sm:$0xf]
  %v98 = vld [vmem:[%s1 + $0x124] sm:$0xf]
  %v99 = vld [vmem:[%s1 + $0x128] sm:$0xf]
  %v100 = vld [vmem:[%s1 + $0x12c] sm:$0xf]
  %v101 = vld [vmem:[%s1 + $0x130] sm:$0xf]
  %v102 = vld [vmem:[%s1 + $0x134] sm:$0xf]
  %v103 = vld [vmem:[%s1 + $0x138] sm:$0xf]
  %v104 = vld [vmem:[%s1 + $0x13c] sm:$0xf]
  %v105 = vld [vmem:[%s1 + $0x140] sm:$0xf]
  %v106 = vld [vmem:[%s1 + $0x144] sm:$0xf]
  %v107 = vld [vmem:[%s1 + $0x148] sm:$0xf]
  %v108 = vld [vmem:[%s1 + $0x14c] sm:$0xf]
  %v109 = vld [vmem:[%s1 + $0x150] sm:$0xf]
  %v110 = vld [vmem:[%s1 + $0x154] sm:$0xf]
  %v111 = vld [vmem:[%s1 + $0x158] sm:$0xf]
  %v112 = vld [vmem:[%s1 + $0x15c] sm:$0xf]
  %v113 = vld [vmem:[%s1 + $0x160] sm:$0xf]
  %v114 = vld [vmem:[%s1 + $0x164] sm:$0xf]
  %v115 = vld [vmem:[%s1 + $0x168] sm:$0xf]
  %v116 = vld [vmem:[%s1 + $0x16c] sm:$0xf]
  %v117 = vld [vmem:[%s1 + $0x170] sm:$0xf]
  %v118 = vld [vmem:[%s1 + $0x174] sm:$0xf]
  %v119 = vld [vmem:[%s1 + $0x178] sm:$0xf]
  %v120 = vld [vmem:[%s1 + $0x17c] sm:$0xf]
  %v121 = vld [vmem:[%s1 + $0x180] sm:$0xf]
  %v122 = vld [vmem:[%s1 + $0x184] sm:$0xf]
  %v123 = vld [vmem:[%s1 + $0x188] sm:$0xf]
  %v124 = vld [vmem:[%s1 + $0x18c] sm:$0xf]
  %v125 = vld [vmem:[%s1 + $0x190] sm:$0xf]
  %v126 = vld [vmem:[%s1 + $0x194] sm:$0xf]
  %v127 = vld [vmem:[%s1 + $0x198] sm:$0xf]
  %v128 = vld [vmem:[%s1 + $0x19c] sm:$0xf]
  %v129 = vld [vmem:[%s1 + $0x1a0] sm:$0xf]
  %v130 = vld [vmem:[%s1 + $0x1a4] sm:$0xf]
  %v131 = vld [vmem:[%s1 + $0x1a8] sm:$0xf]
  %v132 = vld [vmem:[%s1 + $0x1ac] sm:$0xf]
  %v133 = vld [vmem:[%s1 + $0x1b0] sm:$0xf]
  %v134 = vld [vmem:[%s1 + $0x1b4] sm:$0xf]
  %v135 = vld [vmem:[%s1 + $0x1b8] sm:$0xf]
  %v136 = vld [vmem:[%s1 + $0x1bc] sm:$0xf]
  %v137 = vld [vmem:[%s1 + $0x1c0] sm:$0xf]
  %v138 = vld [vmem:[%s1 + $0x1c4] sm:$0xf]
  %v139 = vld [vmem:[%s1 + $0x1c8] sm:$0xf]
  %v140 = vld [vmem:[%s1 + $0x1cc] sm:$0xf]
  %v141 = vld [vmem:[%s1 + $0x1d0] sm:$0xf]
  %v142 = vld [vmem:[%s1 + $0x1d4] sm:$0xf]
  %v143 = vld [vmem:[%s1 + $0x1d8] sm:$0xf]
  %v144 = vld [vmem:[%s1 + $0x1dc] sm:$0xf]
  %v145 = vld [vmem:[%s1 + $0x1e0] sm:$0xf]
  %v146 = vld [vmem:[%s1 + $0x1e4] sm:$0xf]
  %v147 = vld [vmem:[%s1 + $0x1e8] sm:$0xf]
  %v148 = vld [vmem:[%s1 + $0x1ec] sm:$0xf]
  %v149 = vld [vmem:[%s1 + $0x1f0] sm:$0xf]
  %v150 = vld [vmem:[%s1 + $0x1f4] sm:$0xf]
  %v151 = vld [vmem:[%s1 + $0x1f8] sm:$0xf]
  %v152 = vld [vmem:[%s1 + $0x1fc] sm:$0xf]
  %v153 = vld [vmem:[%s2] sm:$0x1]
  %v155 = vlaneseq
  %v156 = vshrl.u32 %v155, 7
  %v157 = vsub.s32 0, %v156
  %v158 = vrot.slane %v153, %v157
  %v164 = vunpack.c.l.b16 %v21
  %v165 = vunpack.c.h.b16 %v21
  %v166 = vunpack.c.l.b16 %v22
  %v167 = vunpack.c.h.b16 %v22
  %v168 = vunpack.c.l.b16 %v23
  %v169 = vunpack.c.h.b16 %v23
  %v170 = vunpack.c.l.b16 %v24
  %v171 = vunpack.c.h.b16 %v24
  %v172 = vpack.c.b16 %v164, %v164
  %v173 = vpack.c.b16 %v165, %v165
  %v174 = vpack.c.b16 %v166, %v166
  %v175 = vpack.c.b16 %v167, %v167
  %v176 = vpack.c.b16 %v168, %v168
  %v177 = vpack.c.b16 %v169, %v169
  %v178 = vpack.c.b16 %v170, %v170
  %v179 = vpack.c.b16 %v171, %v171
  %v316 = vunpack.c.l.b16 %v25
  %v317 = vunpack.c.l.b16 %v26
  %v318 = vunpack.c.l.b16 %v27
  %v319 = vunpack.c.l.b16 %v28
  %v320 = vunpack.c.l.b16 %v29
  %v321 = vunpack.c.l.b16 %v30
  %v322 = vunpack.c.l.b16 %v31
  %v323 = vunpack.c.l.b16 %v32
  %v324 = vunpack.c.l.b16 %v33
  %v325 = vunpack.c.l.b16 %v34
  %v326 = vunpack.c.l.b16 %v35
  %v327 = vunpack.c.l.b16 %v36
  %v328 = vunpack.c.l.b16 %v37
  %v329 = vunpack.c.l.b16 %v38
  %v330 = vunpack.c.l.b16 %v39
  %v331 = vunpack.c.l.b16 %v40
  %v332 = vunpack.c.l.b16 %v41
  %v333 = vunpack.c.l.b16 %v42
  %v334 = vunpack.c.l.b16 %v43
  %v335 = vunpack.c.l.b16 %v44
  %v336 = vunpack.c.l.b16 %v45
  %v337 = vunpack.c.l.b16 %v46
  %v338 = vunpack.c.l.b16 %v47
  %v339 = vunpack.c.l.b16 %v48
  %v340 = vunpack.c.l.b16 %v49
  %v341 = vunpack.c.l.b16 %v50
  %v342 = vunpack.c.l.b16 %v51
  %v343 = vunpack.c.l.b16 %v52
  %v344 = vunpack.c.l.b16 %v53
  %v345 = vunpack.c.l.b16 %v54
  %v346 = vunpack.c.l.b16 %v55
  %v347 = vunpack.c.l.b16 %v56
  %v348 = vunpack.c.l.b16 %v57
  %v349 = vunpack.c.l.b16 %v58
  %v350 = vunpack.c.l.b16 %v59
  %v351 = vunpack.c.l.b16 %v60
  %v352 = vunpack.c.l.b16 %v61
  %v353 = vunpack.c.l.b16 %v62
  %v354 = vunpack.c.l.b16 %v63
  %v355 = vunpack.c.l.b16 %v64
  %v356 = vunpack.c.l.b16 %v65
  %v357 = vunpack.c.l.b16 %v66
  %v358 = vunpack.c.l.b16 %v67
  %v359 = vunpack.c.l.b16 %v68
  %v360 = vunpack.c.l.b16 %v69
  %v361 = vunpack.c.l.b16 %v70
  %v362 = vunpack.c.l.b16 %v71
  %v363 = vunpack.c.l.b16 %v72
  %v364 = vunpack.c.l.b16 %v73
  %v365 = vunpack.c.l.b16 %v74
  %v366 = vunpack.c.l.b16 %v75
  %v367 = vunpack.c.l.b16 %v76
  %v368 = vunpack.c.l.b16 %v77
  %v369 = vunpack.c.l.b16 %v78
  %v370 = vunpack.c.l.b16 %v79
  %v371 = vunpack.c.l.b16 %v80
  %v372 = vunpack.c.l.b16 %v81
  %v373 = vunpack.c.l.b16 %v82
  %v374 = vunpack.c.l.b16 %v83
  %v375 = vunpack.c.l.b16 %v84
  %v376 = vunpack.c.l.b16 %v85
  %v377 = vunpack.c.l.b16 %v86
  %v378 = vunpack.c.l.b16 %v87
  %v379 = vunpack.c.l.b16 %v88
  %v380 = vunpack.c.l.b16 %v89
  %v381 = vunpack.c.l.b16 %v90
  %v382 = vunpack.c.l.b16 %v91
  %v383 = vunpack.c.l.b16 %v92
  %v384 = vunpack.c.l.b16 %v93
  %v385 = vunpack.c.l.b16 %v94
  %v386 = vunpack.c.l.b16 %v95
  %v387 = vunpack.c.l.b16 %v96
  %v388 = vunpack.c.l.b16 %v97
  %v389 = vunpack.c.l.b16 %v98
  %v390 = vunpack.c.l.b16 %v99
  %v391 = vunpack.c.l.b16 %v100
  %v392 = vunpack.c.l.b16 %v101
  %v393 = vunpack.c.l.b16 %v102
  %v394 = vunpack.c.l.b16 %v103
  %v395 = vunpack.c.l.b16 %v104
  %v396 = vunpack.c.l.b16 %v105
  %v397 = vunpack.c.l.b16 %v106
  %v398 = vunpack.c.l.b16 %v107
  %v399 = vunpack.c.l.b16 %v108
  %v400 = vunpack.c.l.b16 %v109
  %v401 = vunpack.c.l.b16 %v110
  %v402 = vunpack.c.l.b16 %v111
  %v403 = vunpack.c.l.b16 %v112
  %v404 = vunpack.c.l.b16 %v113
  %v405 = vunpack.c.l.b16 %v114
  %v406 = vunpack.c.l.b16 %v115
  %v407 = vunpack.c.l.b16 %v116
  %v408 = vunpack.c.l.b16 %v117
  %v409 = vunpack.c.l.b16 %v118
  %v410 = vunpack.c.l.b16 %v119
  %v411 = vunpack.c.l.b16 %v120
  %v412 = vunpack.c.l.b16 %v121
  %v413 = vunpack.c.l.b16 %v122
  %v414 = vunpack.c.l.b16 %v123
  %v415 = vunpack.c.l.b16 %v124
  %v416 = vunpack.c.l.b16 %v125
  %v417 = vunpack.c.l.b16 %v126
  %v418 = vunpack.c.l.b16 %v127
  %v419 = vunpack.c.l.b16 %v128
  %v420 = vunpack.c.l.b16 %v129
  %v421 = vunpack.c.l.b16 %v130
  %v422 = vunpack.c.l.b16 %v131
  %v423 = vunpack.c.l.b16 %v132
  %v424 = vunpack.c.l.b16 %v133
  %v425 = vunpack.c.l.b16 %v134
  %v426 = vunpack.c.l.b16 %v135
  %v427 = vunpack.c.l.b16 %v136
  %v428 = vunpack.c.l.b16 %v137
  %v429 = vunpack.c.l.b16 %v138
  %v430 = vunpack.c.l.b16 %v139
  %v431 = vunpack.c.l.b16 %v140
  %v432 = vunpack.c.l.b16 %v141
  %v433 = vunpack.c.l.b16 %v142
  %v434 = vunpack.c.l.b16 %v143
  %v435 = vunpack.c.l.b16 %v144
  %v436 = vunpack.c.l.b16 %v145
  %v437 = vunpack.c.l.b16 %v146
  %v438 = vunpack.c.l.b16 %v147
  %v439 = vunpack.c.l.b16 %v148
  %v440 = vunpack.c.l.b16 %v149
  %v441 = vunpack.c.l.b16 %v150
  %v442 = vunpack.c.l.b16 %v151
  %v443 = vunpack.c.l.b16 %v152
  %v444 = vpack.c.b16 %v317, %v316
  %v445 = vpack.c.b16 %v319, %v318
  %v446 = vpack.c.b16 %v321, %v320
  %v447 = vpack.c.b16 %v323, %v322
  %v448 = vpack.c.b16 %v325, %v324
  %v449 = vpack.c.b16 %v327, %v326
  %v450 = vpack.c.b16 %v329, %v328
  %v451 = vpack.c.b16 %v331, %v330
  %v452 = vpack.c.b16 %v333, %v332
  %v453 = vpack.c.b16 %v335, %v334
  %v454 = vpack.c.b16 %v337, %v336
  %v455 = vpack.c.b16 %v339, %v338
  %v456 = vpack.c.b16 %v341, %v340
  %v457 = vpack.c.b16 %v343, %v342
  %v458 = vpack.c.b16 %v345, %v344
  %v459 = vpack.c.b16 %v347, %v346
  %v460 = vpack.c.b16 %v349, %v348
  %v461 = vpack.c.b16 %v351, %v350
  %v462 = vpack.c.b16 %v353, %v352
  %v463 = vpack.c.b16 %v355, %v354
  %v464 = vpack.c.b16 %v357, %v356
  %v465 = vpack.c.b16 %v359, %v358
  %v466 = vpack.c.b16 %v361, %v360
  %v467 = vpack.c.b16 %v363, %v362
  %v468 = vpack.c.b16 %v365, %v364
  %v469 = vpack.c.b16 %v367, %v366
  %v470 = vpack.c.b16 %v369, %v368
  %v471 = vpack.c.b16 %v371, %v370
  %v472 = vpack.c.b16 %v373, %v372
  %v473 = vpack.c.b16 %v375, %v374
  %v474 = vpack.c.b16 %v377, %v376
  %v475 = vpack.c.b16 %v379, %v378
  %v476 = vpack.c.b16 %v381, %v380
  %v477 = vpack.c.b16 %v383, %v382
  %v478 = vpack.c.b16 %v385, %v384
  %v479 = vpack.c.b16 %v387, %v386
  %v480 = vpack.c.b16 %v389, %v388
  %v481 = vpack.c.b16 %v391, %v390
  %v482 = vpack.c.b16 %v393, %v392
  %v483 = vpack.c.b16 %v395, %v394
  %v484 = vpack.c.b16 %v397, %v396
  %v485 = vpack.c.b16 %v399, %v398
  %v486 = vpack.c.b16 %v401, %v400
  %v487 = vpack.c.b16 %v403, %v402
  %v488 = vpack.c.b16 %v405, %v404
  %v489 = vpack.c.b16 %v407, %v406
  %v490 = vpack.c.b16 %v409, %v408
  %v491 = vpack.c.b16 %v411, %v410
  %v492 = vpack.c.b16 %v413, %v412
  %v493 = vpack.c.b16 %v415, %v414
  %v494 = vpack.c.b16 %v417, %v416
  %v495 = vpack.c.b16 %v419, %v418
  %v496 = vpack.c.b16 %v421, %v420
  %v497 = vpack.c.b16 %v423, %v422
  %v498 = vpack.c.b16 %v425, %v424
  %v499 = vpack.c.b16 %v427, %v426
  %v500 = vpack.c.b16 %v429, %v428
  %v501 = vpack.c.b16 %v431, %v430
  %v502 = vpack.c.b16 %v433, %v432
  %v503 = vpack.c.b16 %v435, %v434
  %v504 = vpack.c.b16 %v437, %v436
  %v505 = vpack.c.b16 %v439, %v438
  %v506 = vpack.c.b16 %v441, %v440
  %v507 = vpack.c.b16 %v443, %v442
  %572 = vmatprep.subr.bf16.mxu0 0
  %573 = vmatpush1.bf16.msra.mxu0 %v444
  %574 = vmatprep.subr.bf16.mxu0 0
  %575 = vmatpush1.bf16.msra.mxu0 %v445
  %576 = vmatprep.subr.bf16.mxu0 0
  %577 = vmatpush1.bf16.msra.mxu0 %v446
  %578 = vmatprep.subr.bf16.mxu0 0
  %579 = vmatpush1.bf16.msra.mxu0 %v447
  %580 = vmatprep.subr.bf16.mxu0 0
  %581 = vmatpush1.bf16.msra.mxu0 %v448
  %582 = vmatprep.subr.bf16.mxu0 0
  %583 = vmatpush1.bf16.msra.mxu0 %v449
  %584 = vmatprep.subr.bf16.mxu0 0
  %585 = vmatpush1.bf16.msra.mxu0 %v450
  %586 = vmatprep.subr.bf16.mxu0 0
  %587 = vmatpush1.bf16.msra.mxu0 %v451
  %588 = vmatprep.subr.bf16.mxu0 0
  %589 = vmatpush1.bf16.msra.mxu0 %v452
  %590 = vmatprep.subr.bf16.mxu0 0
  %591 = vmatpush1.bf16.msra.mxu0 %v453
  %592 = vmatprep.subr.bf16.mxu0 0
  %593 = vmatpush1.bf16.msra.mxu0 %v454
  %594 = vmatprep.subr.bf16.mxu0 0
  %595 = vmatpush1.bf16.msra.mxu0 %v455
  %596 = vmatprep.subr.bf16.mxu0 0
  %597 = vmatpush1.bf16.msra.mxu0 %v456
  %598 = vmatprep.subr.bf16.mxu0 0
  %599 = vmatpush1.bf16.msra.mxu0 %v457
  %600 = vmatprep.subr.bf16.mxu0 0
  %601 = vmatpush1.bf16.msra.mxu0 %v458
  %602 = vmatprep.subr.bf16.mxu0 0
  %603 = vmatpush1.bf16.msra.mxu0 %v459
  %604 = vmatprep.mubr.bf16.mxu0 %v173
  %605 = vmatmul.mubr.bf16.gmra.mrb[0].mxu0 %v172
  %v606 = vpop.f32.mrb[0].mxu0
  %v607 = vadd.f32 %v158, %v606
  %v608 = vpop.f32.mrb[0].mxu0
  %v609 = vpop.f32.mrb[0].mxu0
  %v610 = vpop.f32.mrb[0].mxu0
  %611 = vdwg.mxu0
  %612 = vmatprep.subr.bf16.mxu0 0
  %613 = vmatpush1.bf16.msra.mxu0 %v460
  %614 = vmatprep.subr.bf16.mxu0 0
  %615 = vmatpush1.bf16.msra.mxu0 %v461
  %616 = vmatprep.subr.bf16.mxu0 0
  %617 = vmatpush1.bf16.msra.mxu0 %v462
  %618 = vmatprep.subr.bf16.mxu0 0
  %619 = vmatpush1.bf16.msra.mxu0 %v463
  %620 = vmatprep.subr.bf16.mxu0 0
  %621 = vmatpush1.bf16.msra.mxu0 %v464
  %622 = vmatprep.subr.bf16.mxu0 0
  %623 = vmatpush1.bf16.msra.mxu0 %v465
  %624 = vmatprep.subr.bf16.mxu0 0
  %625 = vmatpush1.bf16.msra.mxu0 %v466
  %626 = vmatprep.subr.bf16.mxu0 0
  %627 = vmatpush1.bf16.msra.mxu0 %v467
  %628 = vmatprep.subr.bf16.mxu0 0
  %629 = vmatpush1.bf16.msra.mxu0 %v468
  %630 = vmatprep.subr.bf16.mxu0 0
  %631 = vmatpush1.bf16.msra.mxu0 %v469
  %632 = vmatprep.subr.bf16.mxu0 0
  %633 = vmatpush1.bf16.msra.mxu0 %v470
  %634 = vmatprep.subr.bf16.mxu0 0
  %635 = vmatpush1.bf16.msra.mxu0 %v471
  %636 = vmatprep.subr.bf16.mxu0 0
  %637 = vmatpush1.bf16.msra.mxu0 %v472
  %638 = vmatprep.subr.bf16.mxu0 0
  %639 = vmatpush1.bf16.msra.mxu0 %v473
  %640 = vmatprep.subr.bf16.mxu0 0
  %641 = vmatpush1.bf16.msra.mxu0 %v474
  %642 = vmatprep.subr.bf16.mxu0 0
  %643 = vmatpush1.bf16.msra.mxu0 %v475
  %644 = vmatprep.mubr.bf16.mxu0 %v175
  %645 = vmatmul.mubr.bf16.gmra.mrb[0].mxu0 %v174
  %v646 = vpop.f32.mrb[0].mxu0
  %v647 = vadd.f32 %v607, %v646
  %v648 = vpop.f32.mrb[0].mxu0
  %v649 = vpop.f32.mrb[0].mxu0
  %v650 = vpop.f32.mrb[0].mxu0
  %651 = vdwg.mxu0
  %652 = vmatprep.subr.bf16.mxu0 0
  %653 = vmatpush1.bf16.msra.mxu0 %v476
  %654 = vmatprep.subr.bf16.mxu0 0
  %655 = vmatpush1.bf16.msra.mxu0 %v477
  %656 = vmatprep.subr.bf16.mxu0 0
  %657 = vmatpush1.bf16.msra.mxu0 %v478
  %658 = vmatprep.subr.bf16.mxu0 0
  %659 = vmatpush1.bf16.msra.mxu0 %v479
  %660 = vmatprep.subr.bf16.mxu0 0
  %661 = vmatpush1.bf16.msra.mxu0 %v480
  %662 = vmatprep.subr.bf16.mxu0 0
  %663 = vmatpush1.bf16.msra.mxu0 %v481
  %664 = vmatprep.subr.bf16.mxu0 0
  %665 = vmatpush1.bf16.msra.mxu0 %v482
  %666 = vmatprep.subr.bf16.mxu0 0
  %667 = vmatpush1.bf16.msra.mxu0 %v483
  %668 = vmatprep.subr.bf16.mxu0 0
  %669 = vmatpush1.bf16.msra.mxu0 %v484
  %670 = vmatprep.subr.bf16.mxu0 0
  %671 = vmatpush1.bf16.msra.mxu0 %v485
  %672 = vmatprep.subr.bf16.mxu0 0
  %673 = vmatpush1.bf16.msra.mxu0 %v486
  %674 = vmatprep.subr.bf16.mxu0 0
  %675 = vmatpush1.bf16.msra.mxu0 %v487
  %676 = vmatprep.subr.bf16.mxu0 0
  %677 = vmatpush1.bf16.msra.mxu0 %v488
  %678 = vmatprep.subr.bf16.mxu0 0
  %679 = vmatpush1.bf16.msra.mxu0 %v489
  %680 = vmatprep.subr.bf16.mxu0 0
  %681 = vmatpush1.bf16.msra.mxu0 %v490
  %682 = vmatprep.subr.bf16.mxu0 0
  %683 = vmatpush1.bf16.msra.mxu0 %v491
  %684 = vmatprep.mubr.bf16.mxu0 %v177
  %685 = vmatmul.mubr.bf16.gmra.mrb[0].mxu0 %v176
  %v686 = vpop.f32.mrb[0].mxu0
  %v687 = vadd.f32 %v647, %v686
  %v688 = vpop.f32.mrb[0].mxu0
  %v689 = vpop.f32.mrb[0].mxu0
  %v690 = vpop.f32.mrb[0].mxu0
  %691 = vdwg.mxu0
  %692 = vmatprep.subr.bf16.mxu0 0
  %693 = vmatpush1.bf16.msra.mxu0 %v492
  %694 = vmatprep.subr.bf16.mxu0 0
  %695 = vmatpush1.bf16.msra.mxu0 %v493
  %696 = vmatprep.subr.bf16.mxu0 0
  %697 = vmatpush1.bf16.msra.mxu0 %v494
  %698 = vmatprep.subr.bf16.mxu0 0
  %699 = vmatpush1.bf16.msra.mxu0 %v495
  %700 = vmatprep.subr.bf16.mxu0 0
  %701 = vmatpush1.bf16.msra.mxu0 %v496
  %702 = vmatprep.subr.bf16.mxu0 0
  %703 = vmatpush1.bf16.msra.mxu0 %v497
  %704 = vmatprep.subr.bf16.mxu0 0
  %705 = vmatpush1.bf16.msra.mxu0 %v498
  %706 = vmatprep.subr.bf16.mxu0 0
  %707 = vmatpush1.bf16.msra.mxu0 %v499
  %708 = vmatprep.subr.bf16.mxu0 0
  %709 = vmatpush1.bf16.msra.mxu0 %v500
  %710 = vmatprep.subr.bf16.mxu0 0
  %711 = vmatpush1.bf16.msra.mxu0 %v501
  %712 = vmatprep.subr.bf16.mxu0 0
  %713 = vmatpush1.bf16.msra.mxu0 %v502
  %714 = vmatprep.subr.bf16.mxu0 0
  %715 = vmatpush1.bf16.msra.mxu0 %v503
  %716 = vmatprep.subr.bf16.mxu0 0
  %717 = vmatpush1.bf16.msra.mxu0 %v504
  %718 = vmatprep.subr.bf16.mxu0 0
  %719 = vmatpush1.bf16.msra.mxu0 %v505
  %720 = vmatprep.subr.bf16.mxu0 0
  %721 = vmatpush1.bf16.msra.mxu0 %v506
  %722 = vmatprep.subr.bf16.mxu0 0
  %723 = vmatpush1.bf16.msra.mxu0 %v507
  %724 = vmatprep.mubr.bf16.mxu0 %v179
  %725 = vmatmul.mubr.bf16.gmra.mrb[0].mxu0 %v178
  %v726 = vpop.f32.mrb[0].mxu0
  %v727 = vadd.f32 %v687, %v726
  %v728 = vpop.f32.mrb[0].mxu0
  %v729 = vpop.f32.mrb[0].mxu0
  %v730 = vpop.f32.mrb[0].mxu0
  %731 = vdwg.mxu0
  %v732 = vld [vmem:[%s3] sm:$0xff]
  %v733 = vsub.f32 %v732, %v727
  %v734 = vld [vmem:[%s4] sm:$0xff]
  %v735 = vmul.f32 %v733, %v734
  %v736 = vmul.f32 %v735, %v733
  %vm737 = vcmask 130048
  %v738 = vsel %vm737, %v736, 0.0
  %739 = vadd.xlane.f32.xlu0 %v738
  %v740 = vpop.xlane.xlu0 %739
  %v741 = vrot.slane %v740, 4
  %v742 = vadd.f32 %v740, %v741
  %v743 = vrot.slane %v742, 2
  %v744 = vadd.f32 %v742, %v743
  %v745 = vrot.slane %v744, 1
  %v746 = vadd.f32 %v744, %v745
  %s747 = vtos %v746
  %v748 = vmul.f32 %v735, %v735
  %v749 = vsel %vm737, %v748, 0.0
  %750 = vadd.xlane.f32.xlu0 %v749
  %v751 = vpop.xlane.xlu0 %750
  %v752 = vrot.slane %v751, 4
  %v753 = vadd.f32 %v751, %v752
  %v754 = vrot.slane %v753, 2
  %v755 = vadd.f32 %v753, %v754
  %v756 = vrot.slane %v755, 1
  %v757 = vadd.f32 %v755, %v756
  %s758 = vtos %v757
  %s759 = smul.f32 %s758, 0.5
  %v760 = vlaneseq
  %v761 = vand.u32 %v760, 127
  %vm762 = vcmp.eq.s32.totalorder %v761, 0
  %vm763 = vcmp.eq.s32.totalorder %v761, 1
  %v764 = vstv %s759
  %v765 = vsel %vm763, %v764, 0.0
  %v766 = vstv %s747
  %v767 = vsel %vm762, %v766, %v765
  %768 = vst [vmem:[%s5] sm:$0xff] %v767
  // Predicated region
  $region22: #{lyft_regressor_forward.1} parent=0 // pred_check
    _
  $region23: #{lyft_regressor_forward.1} parent=0 // pred_check_branch
    %770 = sbr.rel (0) target = $region25
  $region24: #{lyft_regressor_forward.1} parent=0 // pred_region
    _
  $region25: #{lyft_regressor_forward.1} parent=0 // pred_fallthru
    _
  // Predicated region
  $region26: #{lyft_regressor_forward.1} parent=0 // pred_check
    _
  $region27: #{lyft_regressor_forward.1} parent=0 // pred_check_branch
    %772 = sbr.rel (0) target = $region29
  $region28: #{lyft_regressor_forward.1} parent=0 // pred_region
    _
  $region29: #{lyft_regressor_forward.1} parent=0 // pred_fallthru
    _

</llo_original>
